<compile_context>
chip_gen: v6e
topology: v6e:2x2x1
jax: 0.10.0
libtpu: 0.0.40
codegen_flags: <defaults>
</compile_context>

<pallas_src>
import math

import jax
import jax.numpy as jnp
from jax import lax
from jax.experimental import pallas as pl
from jax.experimental.pallas import tpu as pltpu


# -----------------------------------------------------------------------------
# Generation-aware VMEM budget / tile targets
# -----------------------------------------------------------------------------

_VMEM_LIMIT_CACHE = None


def _vmem_limit_bytes():
    """~70% of physical VMEM (64 MiB v7x, 128 MiB v5e/v6e); 48 MiB fallback."""
    global _VMEM_LIMIT_CACHE
    if _VMEM_LIMIT_CACHE is None:
        limit = 48 * 1024 * 1024
        try:
            cap = getattr(pltpu.get_tpu_info(), "vmem_capacity_bytes", None)
            if cap:
                limit = int(cap * 0.70)
        except Exception:
            pass
        _VMEM_LIMIT_CACHE = limit
    return _VMEM_LIMIT_CACHE


def _is_big_vmem():
    return _vmem_limit_bytes() >= (80 << 20)


def _linear_tile_targets():
    # (tm, tn, tk) targets: larger blocks on 128 MiB parts, conservative on v7x.
    return (512, 1024, 1024) if _is_big_vmem() else (256, 512, 512)


def _attn_tile_targets():
    # (tq, tk) targets.
    return (256, 512) if _is_big_vmem() else (128, 256)


def _choose_tile(dim, target, align):
    """Return (tile, padded_dim). Full dim if small; else aligned divisor; else
    pad the dim up to a multiple of an aligned tile (zero padding)."""
    if dim <= target:
        return dim, dim
    t = (target // align) * align
    while t >= align:
        if dim % t == 0:
            return t, dim
        t -= align
    t = (target // align) * align
    padded = ((dim + t - 1) // t) * t
    return t, padded


def _pick_div_tile(dim, target, align):
    """Largest aligned tile <= target dividing dim; else the full dim."""
    if dim <= target:
        return dim
    t = (target // align) * align
    while t >= align:
        if dim % t == 0:
            return t
        t -= align
    # TODO(synk): masked K/V tail for sequence lengths with no aligned divisor.
    return dim


# -----------------------------------------------------------------------------
# Tiled linear kernel:  o = x @ w + b   (f32 accumulation directly in o_ref)
# -----------------------------------------------------------------------------

def _linear_kernel(x_ref, w_ref, b_ref, o_ref):
    @pl.when(pl.program_id(2) == 0)
    def _():
        o_ref[...] = jnp.broadcast_to(b_ref[...], o_ref.shape).astype(o_ref.dtype)

    o_ref[...] += jnp.dot(
        x_ref[...], w_ref[...], preferred_element_type=jnp.float32
    ).astype(o_ref.dtype)


def linear(x, w, b):
    """Dense layer via a tiled Pallas matmul. x:(M,K), w:(K,N), b:(N,) -> (M,N) f32."""
    m, kdim = x.shape
    n = w.shape[1]
    tm_t, tn_t, tk_t = _linear_tile_targets()
    tm, mp = _choose_tile(m, tm_t, 8)
    tn, np_ = _choose_tile(n, tn_t, 128)
    tk, kp = _choose_tile(kdim, tk_t, 128)

    xp = x if (mp == m and kp == kdim) else jnp.pad(x, ((0, mp - m), (0, kp - kdim)))
    wp = w if (kp == kdim and np_ == n) else jnp.pad(w, ((0, kp - kdim), (0, np_ - n)))
    bp = b if np_ == n else jnp.pad(b, (0, np_ - n))
    b2 = bp.reshape(1, np_)

    grid = (mp // tm, np_ // tn, kp // tk)
    out = pl.pallas_call(
        _linear_kernel,
        out_shape=jax.ShapeDtypeStruct((mp, np_), jnp.float32),
        grid_spec=pltpu.PrefetchScalarGridSpec(
            num_scalar_prefetch=0,
            grid=grid,
            in_specs=[
                pl.BlockSpec((tm, tk), lambda i, j, k: (i, k)),
                pl.BlockSpec((tk, tn), lambda i, j, k: (k, j)),
                pl.BlockSpec((1, tn), lambda i, j, k: (0, j)),
            ],
            out_specs=pl.BlockSpec((tm, tn), lambda i, j, k: (i, j)),
        ),
        compiler_params=pltpu.CompilerParams(
            dimension_semantics=("parallel", "parallel", "arbitrary"),
            vmem_limit_bytes=_vmem_limit_bytes()),
    )(xp, wp, b2)

    if mp != m or np_ != n:
        out = out[:m, :n]
    return out


# -----------------------------------------------------------------------------
# Flash-style multi-head attention core
#   inputs  q, k, v : (B, H, S, dk)
#   output  ctx     : (B, S, D)  (lane-dense, heads re-interleaved in-kernel)
# -----------------------------------------------------------------------------

def _make_flash_kernel(n_heads, dk, combined_scale):
    def kernel(q_ref, k_ref, v_ref, o_ref, m_sc, l_sc, acc_sc):
        ki = pl.program_id(2)

        @pl.when(ki == 0)
        def _():
            m_sc[...] = jnp.full(m_sc.shape, -jnp.inf, m_sc.dtype)
            l_sc[...] = jnp.zeros(l_sc.shape, l_sc.dtype)
            acc_sc[...] = jnp.zeros(acc_sc.shape, acc_sc.dtype)

        # Blocks are (1, H, tq/tk, dk); drop the leading batch dim.
        # Scale/temperature folded into q (S*dk work, not S*S).
        q = q_ref[0] * combined_scale                       # (H, tq, dk)
        k = k_ref[0]                                        # (H, tk, dk)
        v = v_ref[0]                                        # (H, tk, dk)

        # scores[h, i, j] = sum_d q[h, i, d] * k[h, j, d]   (no k.T / XLU work)
        s = lax.dot_general(
            q, k,
            dimension_numbers=(((2,), (2,)), ((0,), (0,))),
            preferred_element_type=jnp.float32)             # (H, tq, tk)

        # Online softmax update (all f32; exact, no approx reciprocal).
        m_prev = m_sc[...]                                  # (H, tq, 1)
        m_new = jnp.maximum(m_prev, jnp.max(s, axis=-1, keepdims=True))
        alpha = jnp.exp(m_prev - m_new)
        p = jnp.exp(s - m_new)                              # (H, tq, tk)
        l_sc[...] = alpha * l_sc[...] + jnp.sum(p, axis=-1, keepdims=True)

        # pv[h, i, d] = sum_j p[h, i, j] * v[h, j, d]
        pv = lax.dot_general(
            p.astype(v.dtype), v,
            dimension_numbers=(((2,), (1,)), ((0,), (0,))),
            preferred_element_type=jnp.float32)             # (H, tq, dk)
        acc_sc[...] = alpha * acc_sc[...] + pv
        m_sc[...] = m_new

        @pl.when(ki == pl.num_programs(2) - 1)
        def _():
            ctx = acc_sc[...] / l_sc[...]                   # (H, tq, dk), exact div
            # Write lane-dense (tq, D) output block: heads interleaved along
            # the last (lane) axis via static per-head slice stores.
            for hh in range(n_heads):
                o_ref[0, :, hh * dk:(hh + 1) * dk] = ctx[hh].astype(o_ref.dtype)

    return kernel


def flash_attention(q, k, v, combined_scale):
    """q, k, v: (B, H, S, dk) f32. Returns context (B, S, H*dk) f32."""
    b, h, s, dk = q.shape
    d = h * dk
    tq_t, tk_t = _attn_tile_targets()
    tq = _pick_div_tile(s, tq_t, 8)
    tk = _pick_div_tile(s, tk_t, 8)
    grid = (b, s // tq, s // tk)

    return pl.pallas_call(
        _make_flash_kernel(h, dk, combined_scale),
        out_shape=jax.ShapeDtypeStruct((b, s, d), q.dtype),
        grid_spec=pltpu.PrefetchScalarGridSpec(
            num_scalar_prefetch=0,
            grid=grid,
            in_specs=[
                pl.BlockSpec((1, h, tq, dk), lambda bi, qi, ki: (bi, 0, qi, 0)),
                pl.BlockSpec((1, h, tk, dk), lambda bi, qi, ki: (bi, 0, ki, 0)),
                pl.BlockSpec((1, h, tk, dk), lambda bi, qi, ki: (bi, 0, ki, 0)),
            ],
            out_specs=pl.BlockSpec((1, tq, d), lambda bi, qi, ki: (bi, qi, 0)),
            scratch_shapes=[
                pltpu.VMEM((h, tq, 1), jnp.float32),   # running max m
                pltpu.VMEM((h, tq, 1), jnp.float32),   # running denom l
                pltpu.VMEM((h, tq, dk), jnp.float32),  # running numerator acc
            ],
        ),
        compiler_params=pltpu.CompilerParams(
            dimension_semantics=("parallel", "parallel", "arbitrary"),
            vmem_limit_bytes=_vmem_limit_bytes()),
    )(q, k, v)


# -----------------------------------------------------------------------------
# MultiHeadAttention forward (glue in plain JAX, compute in Pallas)
# -----------------------------------------------------------------------------

def init_params(key, d_model):
    """Xavier-uniform weights, zero biases (matches _init_weights). The fused
    QKV weight/bias are pre-concatenated once here (not per forward call)."""
    limit = math.sqrt(6.0 / (d_model + d_model))
    keys = jax.random.split(key, 4)
    params = {}
    for name, kk in zip(["q", "k", "v", "o"], keys):
        # stored already transposed: (d_in, d_out) so that y = x @ W + b
        params[f"w{name}"] = jax.random.uniform(
            kk, (d_model, d_model), jnp.float32, minval=-limit, maxval=limit)
        params[f"b{name}"] = jnp.zeros((d_model,), jnp.float32)
    params["wqkv"] = jnp.concatenate(
        [params["wq"], params["wk"], params["wv"]], axis=1)
    params["bqkv"] = jnp.concatenate(
        [params["bq"], params["bk"], params["bv"]], axis=0)
    return params


def multi_head_attention_forward(query, key, value, params, n_heads,
                                 temperature=1.0, scale_factor=None,
                                 fused_qkv=None):
    b, s, d = query.shape
    dk = d // n_heads
    scale = scale_factor if scale_factor is not None else 1.0 / math.sqrt(dk)
    combined_scale = float(scale / temperature)

    if fused_qkv is None:
        # Explicit flag preferred; identity check breaks under jit tracing.
        fused_qkv = (query is key) and (key is value)

    if fused_qkv:
        # Fused QKV projection: read x from HBM once, one (d x 3d) matmul.
        qkv = linear(query.reshape(b * s, d), params["wqkv"], params["bqkv"])
        q2, k2, v2 = qkv[:, :d], qkv[:, d:2 * d], qkv[:, 2 * d:]
    else:
        q2 = linear(query.reshape(b * s, d), params["wq"], params["bq"])
        k2 = linear(key.reshape(b * s, d), params["wk"], params["bk"])
        v2 = linear(value.reshape(b * s, d), params["wv"], params["bv"])

    def to_heads(t):
        # TODO(synk): fold this head-major transpose into the QKV out_spec to
        #             save one HBM round trip per tensor.
        return t.reshape(b, s, n_heads, dk).transpose(0, 2, 1, 3)

    qh, kh, vh = to_heads(q2), to_heads(k2), to_heads(v2)    # (B, H, S, dk)

    ctx = flash_attention(qh, kh, vh, combined_scale)         # (B, S, D) lane-dense

    out = linear(ctx.reshape(b * s, d), params["wo"], params["bo"]).reshape(b, s, d)
    # TODO(synk): nn.Dropout / attention_dropout omitted (eval-mode identity).
    # TODO(synk): optional `mask`, return_attention and use_relative_position
    #             paths not implemented (module defaults take the path above).
    return out


# -----------------------------------------------------------------------------
# Pure-JAX reference (sanity check)
# -----------------------------------------------------------------------------

def _reference_forward(x, params, n_heads, temperature=1.0):
    b, s, d = x.shape
    dk = d // n_heads
    scale = 1.0 / math.sqrt(dk)
    x2 = x.reshape(b * s, d)
    q = (x2 @ params["wq"] + params["bq"]).reshape(b, s, n_heads, dk).transpose(0, 2, 1, 3)
    k = (x2 @ params["wk"] + params["bk"]).reshape(b, s, n_heads, dk).transpose(0, 2, 1, 3)
    v = (x2 @ params["wv"] + params["bv"]).reshape(b, s, n_heads, dk).transpose(0, 2, 1, 3)
    scores = jnp.einsum("bhqd,bhkd->bhqk", q, k) * scale / temperature
    attn = jax.nn.softmax(scores, axis=-1)
    ctx = jnp.einsum("bhqk,bhkd->bhqd", attn, v)
    ctx = ctx.transpose(0, 2, 1, 3).reshape(b * s, d)
    return (ctx @ params["wo"] + params["bo"]).reshape(b, s, d)


# -----------------------------------------------------------------------------
# Main
# -----------------------------------------------------------------------------

if __name__ == "__main__":
    batch, seq_len, d_model, n_heads = 2, 8, 32, 4

    key = jax.random.PRNGKey(0)
    k_x, k_p = jax.random.split(key)
    x = jax.random.normal(k_x, (batch, seq_len, d_model), jnp.float32)
    params = init_params(k_p, d_model)

    out = multi_head_attention_forward(x, x, x, params, n_heads, fused_qkv=True)
    out = jax.block_until_ready(out)

    assert out.shape == (batch, seq_len, d_model)
    assert bool(jnp.all(jnp.isfinite(out)))

    ref = _reference_forward(x, params, n_heads)
    # exact softmax division + f32 accumulation -> tight tolerance
    assert bool(jnp.allclose(out, ref, atol=2e-3, rtol=2e-3))

    print("KERNEL_OK")
</pallas_src>

<mosaic_0001>
module attributes {stable_mosaic.version = 11 : i64} {
  func.func @_linear_kernel(%arg0: i32, %arg1: i32, %arg2: i32, %arg3: memref<16x32xf32, #tpu.memory_space<vmem>>, %arg4: memref<32x96xf32, #tpu.memory_space<vmem>>, %arg5: memref<1x96xf32, #tpu.memory_space<vmem>>, %arg6: memref<16x96xf32, #tpu.memory_space<vmem>>) attributes {dimension_semantics = [#tpu.dimension_semantics<parallel>, #tpu.dimension_semantics<parallel>, #tpu.dimension_semantics<arbitrary>], iteration_bounds = array<i64: 1, 1, 1>, scalar_prefetch = 0 : i64, scratch_operands = 0 : i64, tpu.core_type = #tpu.core_type<tc>, window_params = [{transform_indices = @transform_0, window_bounds = array<i64: 16, 32>}, {transform_indices = @transform_1, window_bounds = array<i64: 32, 96>}, {transform_indices = @transform_2, window_bounds = array<i64: 1, 96>}, {transform_indices = @transform_3, window_bounds = array<i64: 16, 96>}]} {
    %c0_i32 = arith.constant 0 : i32
    %0 = arith.cmpi eq, %arg2, %c0_i32 : i32
    %1 = arith.extui %0 : i1 to i32
    %c0_i32_0 = arith.constant 0 : i32
    %2 = arith.cmpi ne, %1, %c0_i32_0 : i32
    scf.if %2 {
      %c0_8 = arith.constant 0 : index
      %c0_9 = arith.constant 0 : index
      %9 = vector.load %arg5[%c0_8, %c0_9] : memref<1x96xf32, #tpu.memory_space<vmem>>, vector<1x96xf32>
      %10 = vector.shape_cast %9 : vector<1x96xf32> to vector<1x96xf32>
      %11 = vector.broadcast %10 : vector<1x96xf32> to vector<16x96xf32>
      %c0_10 = arith.constant 0 : index
      %c0_11 = arith.constant 0 : index
      %12 = vector.load %arg6[%c0_10, %c0_11] : memref<16x96xf32, #tpu.memory_space<vmem>>, vector<16x96xf32>
      tpu.vector_store %arg6[%c0_10, %c0_11], %11 {strides = array<i32>} : memref<16x96xf32, #tpu.memory_space<vmem>>, vector<16x96xf32>,
    } else {
    }
    %c0 = arith.constant 0 : index
    %c0_1 = arith.constant 0 : index
    %3 = vector.load %arg6[%c0, %c0_1] : memref<16x96xf32, #tpu.memory_space<vmem>>, vector<16x96xf32>
    %c0_2 = arith.constant 0 : index
    %c0_3 = arith.constant 0 : index
    %4 = vector.load %arg3[%c0_2, %c0_3] : memref<16x32xf32, #tpu.memory_space<vmem>>, vector<16x32xf32>
    %c0_4 = arith.constant 0 : index
    %c0_5 = arith.constant 0 : index
    %5 = vector.load %arg4[%c0_4, %c0_5] : memref<32x96xf32, #tpu.memory_space<vmem>>, vector<32x96xf32>
    %cst = arith.constant dense<0.000000e+00> : vector<16x96xf32>
    %6 = tpu.matmul %4, %5, %cst {dimension_numbers = #tpu.dot_dimension_numbers<[1], [0], [0], [1], [0, 0, 1, 1], [], []>} : vector<16x32xf32>, vector<32x96xf32>, vector<16x96xf32> -> vector<16x96xf32>
    %7 = arith.addf %3, %6 : vector<16x96xf32>
    %c0_6 = arith.constant 0 : index
    %c0_7 = arith.constant 0 : index
    %8 = vector.load %arg6[%c0_6, %c0_7] : memref<16x96xf32, #tpu.memory_space<vmem>>, vector<16x96xf32>
    tpu.vector_store %arg6[%c0_6, %c0_7], %7 {strides = array<i32>} : memref<16x96xf32, #tpu.memory_space<vmem>>, vector<16x96xf32>,
    return
  }
  func.func @transform_0(%arg0: i32, %arg1: i32, %arg2: i32) -> (i32, i32) {
    %c0_i32 = arith.constant 0 : i32
    return %arg0, %arg2 : i32, i32
  }
  func.func @transform_1(%arg0: i32, %arg1: i32, %arg2: i32) -> (i32, i32) {
    %c0_i32 = arith.constant 0 : i32
    return %arg2, %arg1 : i32, i32
  }
  func.func @transform_2(%arg0: i32, %arg1: i32, %arg2: i32) -> (i32, i32) {
    %c0_i32 = arith.constant 0 : i32
    %c0_i32_0 = arith.constant 0 : i32
    return %c0_i32, %arg1 : i32, i32
  }
  func.func @transform_3(%arg0: i32, %arg1: i32, %arg2: i32) -> (i32, i32) {
    %c0_i32 = arith.constant 0 : i32
    return %arg0, %arg1 : i32, i32
  }
}

</mosaic_0001>

<llo_original>
// kernel: tpu_custom_call.1
$region0: #{tpu_custom_call.1}
  #allocation0 [shape = 'u32[]', space=smem, size = 0x4, offset = 0x4, fixed_abs, tag = 'smem constant byte address 0x4 - core index']
  #allocation1 [shape = 'u32[144,128]{1,0:T(1,128)}', space=vmem, size = 0x12000, scoped, tag = 'internal scratch']
  %s0 = inlined_call_operand.hbm [shape: f32[16,32], index: 0, kind: input, shape index: {}]
  %s1 = inlined_call_operand.hbm [shape: f32[32,96], index: 1, kind: input, shape index: {}]
  %s2 = inlined_call_operand.vmem [shape: f32[1,96], index: 2, kind: input, shape index: {}]
  %s3 = inlined_call_operand.hbm [shape: f32[16,96], index: 3, kind: output, shape index: {}]
  %s4 = sld [smem:[#allocation0]]
  $region34: #{tpu_custom_call.1} parent=0
    _
  %s6 = ssub.s32 1, %s4
  %s7 = scalar_select 0, %s6, %s4
  $region1: #{tpu_custom_call.1} parent=0
    #allocation2 [shape = 'u8[8192]{0}', space=vmem, size = 0x2000, scoped, tag = 'input window, operand 0, single buffered']
    #allocation3 [shape = 's32[1]{0}', space=sflag, size = 0x4, scoped, tag = 'scoped memory for tpu_custom_call.1']
    #allocation4 [shape = 's32[1]{0}', space=sflag, size = 0x4, scoped, tag = 'scoped memory for tpu_custom_call.1']
    #allocation5 [shape = 'u8[16384]{0}', space=vmem, size = 0x4000, scoped, tag = 'input window, operand 1, single buffered']
    #allocation6 [shape = 's32[1]{0}', space=sflag, size = 0x4, scoped, tag = 'scoped memory for tpu_custom_call.1']
    #allocation7 [shape = 'u8[8192]{0}', space=vmem, size = 0x2000, scoped, tag = 'output window, operand 0, single buffered']
    %8 = vsyncpa [#allocation3], 0
    %9 = vsyncpa [#allocation6], 0
    %10 = vsyncpa [#allocation4], 0
    // Predicated region
    $region2: #{tpu_custom_call.1} parent=1 // pred_check
      _
    $region3: #{tpu_custom_call.1} parent=1 // pred_check_branch
      %12 = sbr.rel (0) target = $region5
    $region4: #{tpu_custom_call.1} parent=1 // pred_region
      %s14 = ssub.s32 256, 256
      %15 = vsyncadd [#allocation3], %s14
      %s16 = sshll.u32 [#allocation2], 4
      %s17 = int_to_ptr.vmem [resolvable:$true] %s16
      %22 = dma.hbm_to_vmem [thread:$0]  %s0, 256, %s17, [#allocation3], 128, 128, 8
    $region5: #{tpu_custom_call.1} parent=1 // pred_fallthru
      _
    // Predicated region
    $region6: #{tpu_custom_call.1} parent=1 // pred_check
      _
    $region7: #{tpu_custom_call.1} parent=1 // pred_check_branch
      %24 = sbr.rel (0) target = $region9
    $region8: #{tpu_custom_call.1} parent=1 // pred_region
      %s26 = ssub.s32 512, 512
      %27 = vsyncadd [#allocation6], %s26
      %s28 = sshll.u32 [#allocation5], 4
      %s29 = int_to_ptr.vmem [resolvable:$true] %s28
      %34 = dma.hbm_to_vmem [thread:$0]  %s1, 512, %s29, [#allocation6], 128, 128, 8
    $region9: #{tpu_custom_call.1} parent=1 // pred_fallthru
      _
    // Predicated region
    $region10: #{tpu_custom_call.1} parent=1 // pred_check
      _
    $region11: #{tpu_custom_call.1} parent=1 // pred_check_branch
      %36 = sbr.rel (0) target = $region13
    $region12: #{tpu_custom_call.1} parent=1 // pred_region
      _
    $region13: #{tpu_custom_call.1} parent=1 // pred_fallthru
      _
    // Predicated region
    $region14: #{tpu_custom_call.1} parent=1 // pred_check
      _
    $region15: #{tpu_custom_call.1} parent=1 // pred_check_branch
      %38 = sbr.rel (0) target = $region17
    $region16: #{tpu_custom_call.1} parent=1 // pred_region
      %39 = dma.done [#allocation3], 256
    $region17: #{tpu_custom_call.1} parent=1 // pred_fallthru
      _
    // Predicated region
    $region18: #{tpu_custom_call.1} parent=1 // pred_check
      _
    $region19: #{tpu_custom_call.1} parent=1 // pred_check_branch
      %41 = sbr.rel (0) target = $region21
    $region20: #{tpu_custom_call.1} parent=1 // pred_region
      %42 = dma.done [#allocation6], 512
    $region21: #{tpu_custom_call.1} parent=1 // pred_fallthru
      _
    %p43 = scmp.eq.s32.totalorder 0, 0
    // Predicated region
    $region22: #{tpu_custom_call.1} parent=1 // pred_check
      %p44 = pneg %p43
    $region23: #{tpu_custom_call.1} parent=1 // pred_check_branch
      %46 = sbr.rel (%p44) target = $region25
    $region24: #{tpu_custom_call.1} parent=1 // pred_region
      %v47 = vld [vmem:[%s2] sm:$0x1]
      %v49 = vlaneseq
      %v50 = vshrl.u32 %v49, 7
      %v51 = vsub.s32 0, %v50
      %v52 = vrot.slane %v47, %v51
      %vm54 = vcmask 785408
      %55 = vst.msk [vmem:[#allocation7] sm:$0xff] %vm54, %v52
      %56 = vst.msk [vmem:[#allocation7 + $0x8] sm:$0xff] %vm54, %v52
    $region25: #{tpu_custom_call.1} parent=1 // pred_fallthru
      _
    %v57 = vld [vmem:[#allocation7] sm:$0xff]
    %v58 = vld [vmem:[#allocation7 + $0x8] sm:$0xff]
    %v59 = vld [vmem:[#allocation2] sm:$0xff]
    %v60 = vld [vmem:[#allocation2 + $0x8] sm:$0xff]
    %v61 = vld [vmem:[#allocation5] sm:$0xff]
    %v62 = vld [vmem:[#allocation5 + $0x8] sm:$0xff]
    %v63 = vld [vmem:[#allocation5 + $0x10] sm:$0xff]
    %v64 = vld [vmem:[#allocation5 + $0x18] sm:$0xff]
    %vm65 = vcmask 261120
    %v67 = vsel %vm65, %v59, 0
    %v70 = vsel %vm65, %v60, 0
    %72 = vmatprep.subr.mxu0 0.0
    %73 = vmatpush1.msra.mxu0 0.0
    %74 = vmatprep.subr.mxu0 0.0
    %75 = vmatpush1.msra.mxu0 0.0
    %76 = vmatprep.subr.mxu0 0.0
    %77 = vmatpush1.msra.mxu0 0.0
    %78 = vmatprep.subr.mxu0 0.0
    %79 = vmatpush1.msra.mxu0 0.0
    %80 = vmatprep.subr.mxu0 0.0
    %81 = vmatpush1.msra.mxu0 0.0
    %82 = vmatprep.subr.mxu0 0.0
    %83 = vmatpush1.msra.mxu0 0.0
    %84 = vmatprep.subr.mxu0 0.0
    %85 = vmatpush1.msra.mxu0 0.0
    %86 = vmatprep.subr.mxu0 0.0
    %87 = vmatpush1.msra.mxu0 0.0
    %88 = vmatprep.subr.mxu0 0.0
    %89 = vmatpush1.msra.mxu0 0.0
    %90 = vmatprep.subr.mxu0 0.0
    %91 = vmatpush1.msra.mxu0 0.0
    %92 = vmatprep.subr.mxu0 0.0
    %93 = vmatpush1.msra.mxu0 0.0
    %94 = vmatprep.subr.mxu0 0.0
    %95 = vmatpush1.msra.mxu0 0.0
    %96 = vmatprep.subr.mxu0 0.0
    %97 = vmatpush1.msra.mxu0 %v64
    %98 = vmatprep.subr.mxu0 0.0
    %99 = vmatpush1.msra.mxu0 %v63
    %100 = vmatprep.subr.mxu0 0.0
    %101 = vmatpush1.msra.mxu0 %v62
    %102 = vmatprep.subr.mxu0 0.0
    %103 = vmatpush1.msra.mxu0 %v61
    %104 = vmatprep.subr.mxu0 0.0
    %105 = vmatpush2.msra.mxu0 0.0
    %106 = vmatprep.subr.mxu0 0.0
    %107 = vmatpush2.msra.mxu0 0.0
    %108 = vmatprep.subr.mxu0 0.0
    %109 = vmatpush2.msra.mxu0 0.0
    %110 = vmatprep.subr.mxu0 0.0
    %111 = vmatpush2.msra.mxu0 0.0
    %112 = vmatprep.subr.mxu0 0.0
    %113 = vmatpush2.msra.mxu0 0.0
    %114 = vmatprep.subr.mxu0 0.0
    %115 = vmatpush2.msra.mxu0 0.0
    %116 = vmatprep.subr.mxu0 0.0
    %117 = vmatpush2.msra.mxu0 0.0
    %118 = vmatprep.subr.mxu0 0.0
    %119 = vmatpush2.msra.mxu0 0.0
    %120 = vmatprep.subr.mxu0 0.0
    %121 = vmatpush2.msra.mxu0 0.0
    %122 = vmatprep.subr.mxu0 0.0
    %123 = vmatpush2.msra.mxu0 0.0
    %124 = vmatprep.subr.mxu0 0.0
    %125 = vmatpush2.msra.mxu0 0.0
    %126 = vmatprep.subr.mxu0 0.0
    %127 = vmatpush2.msra.mxu0 0.0
    %128 = vmatprep.subr.mxu0 0.0
    %129 = vmatpush2.msra.mxu0 0.0
    %130 = vmatprep.subr.mxu0 0.0
    %131 = vmatpush2.msra.mxu0 0.0
    %132 = vmatprep.subr.mxu0 0.0
    %133 = vmatpush2.msra.mxu0 0.0
    %134 = vmatprep.subr.mxu0 0.0
    %135 = vmatpush2.msra.mxu0 0.0
    %136 = vmatprep.mubr.f32.mxu0 0.0
    %137 = vmatmul.mubr.f32.gmra.mxu0 %v67
    %v138 = vpop.f32.mrf.mxu0
    %v139 = vadd.f32 0.0, %v138
    %v140 = vpop.f32.mrf.mxu0
    %141 = vmatprep.mubr.f32.mxu0 0.0
    %142 = vmatmul.mubr.f32.gmra.mxu0 %v70
    %v143 = vpop.f32.mrf.mxu0
    %v144 = vadd.f32 0.0, %v143
    %v145 = vpop.f32.mrf.mxu0
    %146 = vdwg.mxu0
    %v147 = vadd.f32 %v57, %v139
    %v148 = vadd.f32 %v58, %v144
    %vm149 = vcmask 785408
    %150 = vst.msk [vmem:[#allocation7] sm:$0xff] %vm149, %v147
    %151 = vst.msk [vmem:[#allocation7 + $0x8] sm:$0xff] %vm149, %v148
    // Predicated region
    $region26: #{tpu_custom_call.1} parent=1 // pred_check
      _
    $region27: #{tpu_custom_call.1} parent=1 // pred_check_branch
      %153 = sbr.rel (0) target = $region29
    $region28: #{tpu_custom_call.1} parent=1 // pred_region
      %s155 = ssub.s32 256, 256
      %156 = vsyncadd [#allocation4], %s155
      %s157 = sshll.u32 [#allocation7], 4
      %s158 = int_to_ptr.vmem [resolvable:$true] %s157
      %163 = dma.vmem_to_hbm [thread:$0]  %s158, 256, %s3, [#allocation4], 128, 128, 8
    $region29: #{tpu_custom_call.1} parent=1 // pred_fallthru
      _
    // Predicated region
    $region30: #{tpu_custom_call.1} parent=1 // pred_check
      _
    $region31: #{tpu_custom_call.1} parent=1 // pred_check_branch
      %165 = sbr.rel (0) target = $region33
    $region32: #{tpu_custom_call.1} parent=1 // pred_region
      %166 = dma.done [#allocation4], 256
    $region33: #{tpu_custom_call.1} parent=1 // pred_fallthru
      _
    %167 = vsyncpa [#allocation3], 1
    %168 = vsyncpa [#allocation6], 1
    %169 = vsyncpa [#allocation4], 1

</llo_original>
